<compile_context>
chip_gen: v5e
topology: v5e:2x2
jax: 0.10.0
libtpu: 0.0.40
codegen_flags: <defaults>
</compile_context>

<pallas_src>
import functools
import math

import jax
import jax.numpy as jnp
from jax.experimental import pallas as pl
from jax.experimental.pallas import tpu as pltpu


# ---------------------------- generation-aware VMEM ----------------------------

@functools.lru_cache(maxsize=None)
def _vmem_limit_bytes():
    """Scoped-VMEM budget: ~3/4 of physical (v5e/v6e -> 96 MiB, v7x -> 48 MiB)."""
    cap = None
    try:
        cap = getattr(pltpu.get_tpu_info(), "vmem_capacity_bytes", None)
    except Exception:
        cap = None
    if not cap:
        return 48 * 1024 * 1024
    return int(min(cap * 3 // 4, 100 * 1024 * 1024))


def _compiler_params(dim_sems):
    return pltpu.CompilerParams(dimension_semantics=dim_sems,
                                vmem_limit_bytes=_vmem_limit_bytes())


def _fit(dim, pref):
    """Largest 128-multiple tile <= pref that divides dim, else the full extent.

    The full-extent fallback is only taken for small (toy) dims; large
    non-128-multiple dims (the vocab) are padded by the caller instead.
    """
    if dim <= pref:
        return dim
    for t in (pref, 1024, 512, 256, 128):
        if t <= pref and dim % t == 0:
            return t
    return dim  # TODO(synk): pad/mask large non-128-multiple model dims instead.


# ----------------------------- in-kernel math ----------------------------------

def _gelu_tanh(x):
    c = math.sqrt(2.0 / math.pi)
    return 0.5 * x * (1.0 + jnp.tanh(c * (x + 0.044715 * x * x * x)))


# ------------------------------- LayerNorm --------------------------------------

def _ln_kernel(x_ref, g_ref, b_ref, o_ref, *, eps):
    x = x_ref[...].astype(jnp.float32)
    mu = jnp.mean(x, axis=-1, keepdims=True)
    var = jnp.mean((x - mu) ** 2, axis=-1, keepdims=True)
    y = (x - mu) * jax.lax.rsqrt(var + eps) * g_ref[...] + b_ref[...]
    o_ref[...] = y.astype(o_ref.dtype)


def layer_norm(x, g, b, *, eps=1e-5, tm=512):
    """x: (M, D) f32 -> (M, D) bf16 normalized (ready for bf16 MXU matmul)."""
    M, D = x.shape
    tm = _fit(M, tm)
    return pl.pallas_call(
        functools.partial(_ln_kernel, eps=eps),
        out_shape=jax.ShapeDtypeStruct((M, D), jnp.bfloat16),
        grid_spec=pltpu.PrefetchScalarGridSpec(
            num_scalar_prefetch=0, grid=(M // tm,),
            in_specs=[pl.BlockSpec((tm, D), lambda i: (i, 0)),
                      pl.BlockSpec((1, D), lambda i: (0, 0)),
                      pl.BlockSpec((1, D), lambda i: (0, 0))],
            out_specs=pl.BlockSpec((tm, D), lambda i: (i, 0))),
        compiler_params=_compiler_params(("parallel",)),
    )(x, g, b)


# ------------------------ gridded matmul with epilogue --------------------------

def _mm_kernel(*refs, has_bias, has_residual, act):
    x_ref, w_ref = refs[0], refs[1]
    idx = 2
    bias_ref = refs[idx] if has_bias else None
    idx += int(has_bias)
    res_ref = refs[idx] if has_residual else None
    idx += int(has_residual)
    out_ref, acc_ref = refs[idx], refs[idx + 1]

    k = pl.program_id(2)

    @pl.when(k == 0)
    def _():
        acc_ref[...] = jnp.zeros_like(acc_ref)

    acc_ref[...] += jnp.dot(x_ref[...], w_ref[...],
                            preferred_element_type=jnp.float32)

    @pl.when(k == pl.num_programs(2) - 1)
    def _():
        y = acc_ref[...]
        if has_bias:
            y = y + bias_ref[...].astype(jnp.float32)
        if act == "gelu":
            y = _gelu_tanh(y)
        if has_residual:
            y = y + res_ref[...].astype(jnp.float32)
        out_ref[...] = y.astype(out_ref.dtype)


def matmul(x, w, *, bias=None, residual=None, act=None,
           out_dtype=jnp.float32, tm=512, tn=512, tk=512):
    """y = epilogue(x @ w); x:(M,K), w:(K,N) bf16 MXU operands, f32 accumulate."""
    M, K = x.shape
    K2, N = w.shape
    assert K == K2
    tm, tn, tk = _fit(M, tm), _fit(N, tn), _fit(K, tk)
    grid = (M // tm, N // tn, K // tk)

    in_specs = [pl.BlockSpec((tm, tk), lambda i, j, k: (i, k)),
                pl.BlockSpec((tk, tn), lambda i, j, k: (k, j))]
    args = [x.astype(jnp.bfloat16), w.astype(jnp.bfloat16)]
    if bias is not None:
        in_specs.append(pl.BlockSpec((1, tn), lambda i, j, k: (0, j)))
        args.append(bias)
    if residual is not None:
        in_specs.append(pl.BlockSpec((tm, tn), lambda i, j, k: (i, j)))
        args.append(residual)

    # TODO(synk): cross-pallas_call prefetch (P10) of the next layer's weights /
    # pipeline_mode=pl.Buffered(3) on the weight spec for decode-sized M.
    kernel = functools.partial(_mm_kernel, has_bias=bias is not None,
                               has_residual=residual is not None, act=act)
    return pl.pallas_call(
        kernel,
        out_shape=jax.ShapeDtypeStruct((M, N), out_dtype),
        grid_spec=pltpu.PrefetchScalarGridSpec(
            num_scalar_prefetch=0, grid=grid,
            in_specs=in_specs,
            out_specs=pl.BlockSpec((tm, tn), lambda i, j, k: (i, j)),
            scratch_shapes=[pltpu.VMEM((tm, tn), jnp.float32)]),
        compiler_params=_compiler_params(("parallel", "parallel", "arbitrary")),
    )(*args)


# -------------------------- flash causal attention ------------------------------

def _flash_attn_kernel(q_ref, k_ref, v_ref, o_ref, m_sc, l_sc, acc_sc, *,
                       scale, tq, tkv):
    qi = pl.program_id(2)
    ki = pl.program_id(3)

    @pl.when(ki == 0)
    def _():
        m_sc[...] = jnp.full_like(m_sc, -jnp.inf)
        l_sc[...] = jnp.zeros_like(l_sc)
        acc_sc[...] = jnp.zeros_like(acc_sc)

    q_start = qi * tq
    k_start = ki * tkv

    # Skip KV tiles that are entirely in the causal future of this q tile.
    @pl.when(k_start < q_start + tq)
    def _():
        s = jax.lax.dot_general(q_ref[...], k_ref[...], (((1,), (1,)), ((), ())),
                                preferred_element_type=jnp.float32)   # (tq, tkv)
        s = s * scale                                  # 1/sqrt(hd) on f32 scores
        row = q_start + jax.lax.broadcasted_iota(jnp.int32, (tq, tkv), 0)
        col = k_start + jax.lax.broadcasted_iota(jnp.int32, (tq, tkv), 1)
        s = jnp.where(row >= col, s, -1e30)            # causal mask in f32
        m_prev = m_sc[...]
        m_new = jnp.maximum(m_prev, jnp.max(s, axis=-1, keepdims=True))
        alpha = jnp.exp(m_prev - m_new)
        p = jnp.exp(s - m_new)
        l_sc[...] = alpha * l_sc[...] + jnp.sum(p, axis=-1, keepdims=True)
        acc_sc[...] = alpha * acc_sc[...] + jnp.dot(
            p.astype(v_ref.dtype), v_ref[...], preferred_element_type=jnp.float32)
        m_sc[...] = m_new

    @pl.when(ki == pl.num_programs(3) - 1)
    def _():
        o_ref[...] = (acc_sc[...] *
                      pl.reciprocal(l_sc[...], approx=True)).astype(o_ref.dtype)


def attention(q, k, v):
    """Flash-style causal attention. q/k/v: (B, H, T, hd) bf16 -> (B, H, T, hd) bf16."""
    # TODO(synk): pack 2-4 heads per grid cell (batched hqd,hkd->hqk) to fill
    # the 128 lanes when hd < 128 and amortize mask/softmax stats.
    B, H, T, hd = q.shape
    scale = 1.0 / math.sqrt(hd)
    tq = _fit(T, 256)
    tkv = _fit(T, 512)
    nq, nkv = T // tq, T // tkv

    q_spec = pl.BlockSpec((None, None, tq, hd), lambda b, h, qi, ki: (b, h, qi, 0))
    kv_spec = pl.BlockSpec((None, None, tkv, hd), lambda b, h, qi, ki: (b, h, ki, 0))
    return pl.pallas_call(
        functools.partial(_flash_attn_kernel, scale=scale, tq=tq, tkv=tkv),
        out_shape=jax.ShapeDtypeStruct((B, H, T, hd), jnp.bfloat16),
        grid_spec=pltpu.PrefetchScalarGridSpec(
            num_scalar_prefetch=0, grid=(B, H, nq, nkv),
            in_specs=[q_spec, kv_spec, kv_spec],
            out_specs=pl.BlockSpec((None, None, tq, hd),
                                   lambda b, h, qi, ki: (b, h, qi, 0)),
            scratch_shapes=[pltpu.VMEM((tq, 1), jnp.float32),
                            pltpu.VMEM((tq, 1), jnp.float32),
                            pltpu.VMEM((tq, hd), jnp.float32)]),
        compiler_params=_compiler_params(
            ("parallel", "parallel", "parallel", "arbitrary")),
    )(q, k, v)


# ----------------------------- transformer block --------------------------------

def run_block(x, blk, n_heads):
    B, T, D = x.shape
    H = n_heads
    hd = D // H
    M = B * T
    x2 = x.reshape(M, D)                                        # f32 residual stream

    # ---- attention branch: x + O(attn(LN1(x))) ----
    h = layer_norm(x2, blk['ln1_g'], blk['ln1_b'])               # (M, D) bf16
    qkv = matmul(h, blk['wqkv'], out_dtype=jnp.bfloat16)         # (M, 3D) bf16
    qkv = qkv.reshape(B, T, 3, H, hd)
    # TODO(synk): fuse the head split into the attention BlockSpecs (needs a
    # head-minor layout to keep the last-two block dims (8,128)-aligned);
    # currently bf16 layout-glue transposes in plain JAX.
    q = jnp.transpose(qkv[:, :, 0], (0, 2, 1, 3))                # (B, H, T, hd)
    k = jnp.transpose(qkv[:, :, 1], (0, 2, 1, 3))
    v = jnp.transpose(qkv[:, :, 2], (0, 2, 1, 3))
    y = attention(q, k, v)                                       # (B, H, T, hd) bf16
    y = jnp.transpose(y, (0, 2, 1, 3)).reshape(M, D)             # (M, D) bf16
    x2 = matmul(y, blk['wo'], residual=x2, out_dtype=jnp.float32)

    # ---- MLP branch: x + W2(gelu_tanh(W1(LN2(x)) + b1)) + b2 ----
    h = layer_norm(x2, blk['ln2_g'], blk['ln2_b'])               # (M, D) bf16
    h1 = matmul(h, blk['w1'], bias=blk['b1'], act="gelu",
                out_dtype=jnp.bfloat16)                          # (M, 4D) bf16
    x2 = matmul(h1, blk['w2'], bias=blk['b2'], residual=x2,
                out_dtype=jnp.float32)                           # (M, D) f32
    return x2.reshape(B, T, D)


# --------------------------------- parameters ------------------------------------

def init_params(key, vocab_size, ctx_size, d_emb, n_layers):
    keys = jax.random.split(key, 2 + n_layers)
    wte = 0.02 * jax.random.normal(keys[0], (vocab_size, d_emb), jnp.float32)
    v_pad = (-vocab_size) % 128                                  # pad vocab to 128
    wte_t = jnp.pad(wte, ((0, v_pad), (0, 0))).T                 # (D, Vpad) tied head
    params = {
        'wte': wte.astype(jnp.bfloat16),
        'wte_t': wte_t.astype(jnp.bfloat16),
        'wpe': (0.02 * jax.random.normal(keys[1], (ctx_size, d_emb),
                                         jnp.float32)).astype(jnp.bfloat16),
        'lnf_g': jnp.ones((1, d_emb), jnp.float32),
        'lnf_b': jnp.zeros((1, d_emb), jnp.float32),
        'blocks': [],
    }
    for l in range(n_layers):
        ks = jax.random.split(keys[2 + l], 4)
        params['blocks'].append(dict(
            ln1_g=jnp.ones((1, d_emb), jnp.float32),
            ln1_b=jnp.zeros((1, d_emb), jnp.float32),
            wqkv=(0.02 * jax.random.normal(ks[0], (d_emb, 3 * d_emb),
                                           jnp.float32)).astype(jnp.bfloat16),
            wo=(0.02 * jax.random.normal(ks[1], (d_emb, d_emb),
                                         jnp.float32)).astype(jnp.bfloat16),
            ln2_g=jnp.ones((1, d_emb), jnp.float32),
            ln2_b=jnp.zeros((1, d_emb), jnp.float32),
            w1=(0.02 * jax.random.normal(ks[2], (d_emb, 4 * d_emb),
                                         jnp.float32)).astype(jnp.bfloat16),
            b1=jnp.zeros((1, 4 * d_emb), jnp.float32),
            w2=(0.02 * jax.random.normal(ks[3], (4 * d_emb, d_emb),
                                         jnp.float32)).astype(jnp.bfloat16),
            b2=jnp.zeros((1, d_emb), jnp.float32),
        ))
    return params


# ---------------------------------- forward ---------------------------------------

def gpt_forward(tokens, params, n_heads):
    """targets=None path of GPT.forward: returns (logits (B,1,V), None)."""
    B, T = tokens.shape
    assert T <= params['wpe'].shape[0]
    V = params['wte'].shape[0]

    # embedding gather is glue (plain JAX); residual stream kept in f32
    x = (jnp.take(params['wte'], tokens, axis=0).astype(jnp.float32)
         + params['wpe'][:T][None, :, :].astype(jnp.float32))

    for blk in params['blocks']:
        x = run_block(x, blk, n_heads)

    # head: final LN + tied-embedding logits on the LAST token only
    x_last = x[:, -1, :]                                          # (B, D) f32
    xn = layer_norm(x_last, params['lnf_g'], params['lnf_b'])     # (B, D) bf16
    logits = matmul(xn, params['wte_t'], out_dtype=jnp.float32,
                    tn=512, tk=512)[:, :V]                        # (B, V) f32

    # TODO(synk): targets/cross-entropy branch not exercised (inference path only).
    return logits.reshape(B, 1, -1), None


# ------------------------------------ main ------------------------------------------

if __name__ == "__main__":
    vocab_size, ctx_size, d_emb, n_layers, n_heads = 64, 16, 32, 2, 4
    batch, seq = 2, 8

    key = jax.random.PRNGKey(0)
    pkey, tkey = jax.random.split(key)
    params = init_params(pkey, vocab_size, ctx_size, d_emb, n_layers)
    tokens = jax.random.randint(tkey, (batch, seq), 0, vocab_size, dtype=jnp.int32)

    logits, loss = gpt_forward(tokens, params, n_heads)
    logits = jax.block_until_ready(logits)
    assert logits.shape == (batch, 1, vocab_size)
    assert loss is None
    print("KERNEL_OK")
</pallas_src>

<mosaic_0001>
module attributes {stable_mosaic.version = 11 : i64} {
  func.func @_ln_kernel(%arg0: i32, %arg1: memref<16x32xf32, #tpu.memory_space<vmem>>, %arg2: memref<1x32xf32, #tpu.memory_space<vmem>>, %arg3: memref<1x32xf32, #tpu.memory_space<vmem>>, %arg4: memref<16x32xbf16, #tpu.memory_space<vmem>>) attributes {dimension_semantics = [#tpu.dimension_semantics<parallel>], iteration_bounds = array<i64: 1>, scalar_prefetch = 0 : i64, scratch_operands = 0 : i64, tpu.core_type = #tpu.core_type<tc>, window_params = [{transform_indices = @transform_0, window_bounds = array<i64: 16, 32>}, {pipeline_mode = #tpu.pipeline_mode<synchronous>, transform_indices = @transform_1, window_bounds = array<i64: 1, 32>}, {pipeline_mode = #tpu.pipeline_mode<synchronous>, transform_indices = @transform_2, window_bounds = array<i64: 1, 32>}, {transform_indices = @transform_3, window_bounds = array<i64: 16, 32>}]} {
    %c0 = arith.constant 0 : index
    %c0_0 = arith.constant 0 : index
    %0 = vector.load %arg1[%c0, %c0_0] : memref<16x32xf32, #tpu.memory_space<vmem>>, vector<16x32xf32>
    %cst = arith.constant dense<0.000000e+00> : vector<16xf32>
    %1 = vector.multi_reduction <add>, %0, %cst [1] : vector<16x32xf32> to vector<16xf32>
    %2 = vector.shape_cast %1 : vector<16xf32> to vector<16x1xf32>
    %cst_1 = arith.constant 3.200000e+01 : f32
    %3 = vector.broadcast %cst_1 : f32 to vector<16x1xf32>
    %4 = arith.divf %2, %3 : vector<16x1xf32>
    %5 = vector.broadcast %4 : vector<16x1xf32> to vector<16x32xf32>
    %6 = arith.subf %0, %5 : vector<16x32xf32>
    %7 = arith.mulf %6, %6 : vector<16x32xf32>
    %cst_2 = arith.constant dense<0.000000e+00> : vector<16xf32>
    %8 = vector.multi_reduction <add>, %7, %cst_2 [1] : vector<16x32xf32> to vector<16xf32>
    %9 = vector.shape_cast %8 : vector<16xf32> to vector<16x1xf32>
    %cst_3 = arith.constant 3.200000e+01 : f32
    %10 = vector.broadcast %cst_3 : f32 to vector<16x1xf32>
    %11 = arith.divf %9, %10 : vector<16x1xf32>
    %12 = vector.broadcast %4 : vector<16x1xf32> to vector<16x32xf32>
    %13 = arith.subf %0, %12 : vector<16x32xf32>
    %cst_4 = arith.constant 9.99999974E-6 : f32
    %14 = vector.broadcast %cst_4 : f32 to vector<16x1xf32>
    %15 = arith.addf %11, %14 : vector<16x1xf32>
    %16 = math.rsqrt %15 : vector<16x1xf32>
    %17 = vector.broadcast %16 : vector<16x1xf32> to vector<16x32xf32>
    %18 = arith.mulf %13, %17 : vector<16x32xf32>
    %c0_5 = arith.constant 0 : index
    %c0_6 = arith.constant 0 : index
    %19 = vector.load %arg2[%c0_5, %c0_6] : memref<1x32xf32, #tpu.memory_space<vmem>>, vector<1x32xf32>
    %20 = vector.broadcast %19 : vector<1x32xf32> to vector<16x32xf32>
    %21 = arith.mulf %18, %20 : vector<16x32xf32>
    %c0_7 = arith.constant 0 : index
    %c0_8 = arith.constant 0 : index
    %22 = vector.load %arg3[%c0_7, %c0_8] : memref<1x32xf32, #tpu.memory_space<vmem>>, vector<1x32xf32>
    %23 = vector.broadcast %22 : vector<1x32xf32> to vector<16x32xf32>
    %24 = arith.addf %21, %23 : vector<16x32xf32>
    %25 = arith.truncf %24 : vector<16x32xf32> to vector<16x32xbf16>
    %c0_9 = arith.constant 0 : index
    %c0_10 = arith.constant 0 : index
    %26 = vector.load %arg4[%c0_9, %c0_10] : memref<16x32xbf16, #tpu.memory_space<vmem>>, vector<16x32xbf16>
    tpu.vector_store %arg4[%c0_9, %c0_10], %25 {strides = array<i32>} : memref<16x32xbf16, #tpu.memory_space<vmem>>, vector<16x32xbf16>,
    return
  }
  func.func @transform_0(%arg0: i32) -> (i32, i32) {
    %c0_i32 = arith.constant 0 : i32
    %c0_i32_0 = arith.constant 0 : i32
    return %arg0, %c0_i32 : i32, i32
  }
  func.func @transform_1(%arg0: i32) -> (i32, i32) {
    %c0_i32 = arith.constant 0 : i32
    %c0_i32_0 = arith.constant 0 : i32
    %c0_i32_1 = arith.constant 0 : i32
    return %c0_i32, %c0_i32_0 : i32, i32
  }
  func.func @transform_2(%arg0: i32) -> (i32, i32) {
    %c0_i32 = arith.constant 0 : i32
    %c0_i32_0 = arith.constant 0 : i32
    %c0_i32_1 = arith.constant 0 : i32
    return %c0_i32, %c0_i32_0 : i32, i32
  }
  func.func @transform_3(%arg0: i32) -> (i32, i32) {
    %c0_i32 = arith.constant 0 : i32
    %c0_i32_0 = arith.constant 0 : i32
    return %arg0, %c0_i32 : i32, i32
  }
}

</mosaic_0001>

<llo_original>
// kernel: tpu_custom_call.1
$region0: #{tpu_custom_call.1}
  #allocation0 [shape = 'u32[]', space=smem, size = 0x4, offset = 0x4, fixed_abs, tag = 'smem constant byte address 0x4 - core index']
  #allocation1 [shape = 'u32[72,128]{1,0:T(1,128)}', space=vmem, size = 0x9000, scoped, tag = 'internal scratch']
  %s0 = inlined_call_operand.hbm [shape: f32[16,32], index: 0, kind: input, shape index: {}]
  %s1 = inlined_call_operand.hbm [shape: f32[1,32], index: 1, kind: input, shape index: {}]
  %s2 = inlined_call_operand.vmem [shape: f32[1,32], index: 2, kind: input, shape index: {}]
  %s3 = inlined_call_operand.hbm [shape: bf16[16,32], index: 3, kind: output, shape index: {}]
  %s4 = sld [smem:[#allocation0]]
  $region30: #{tpu_custom_call.1} parent=0
    _
  %s6 = ssub.s32 1, %s4
  %s7 = scalar_select 0, %s6, %s4
  $region1: #{tpu_custom_call.1} parent=0
    #allocation2 [shape = 'u8[8192]{0}', space=vmem, size = 0x2000, scoped, tag = 'input window, operand 0, single buffered']
    #allocation3 [shape = 's32[1]{0}', space=sflag, size = 0x4, scoped, tag = 'scoped memory for tpu_custom_call.1']
    #allocation4 [shape = 's32[1]{0}', space=sflag, size = 0x4, scoped, tag = 'scoped memory for tpu_custom_call.1']
    #allocation5 [shape = 'u8[512]{0}', space=vmem, size = 0x400, scoped, tag = 'input window, operand 1, single buffered']
    #allocation6 [shape = 's32[1]{0}', space=sflag, size = 0x4, scoped, tag = 'scoped memory for tpu_custom_call.1']
    #allocation7 [shape = 'u8[4096]{0}', space=vmem, size = 0x1000, scoped, tag = 'output window, operand 0, single buffered']
    %8 = vsyncpa [#allocation3], 0
    %9 = vsyncpa [#allocation6], 0
    %10 = vsyncpa [#allocation4], 0
    // Predicated region
    $region2: #{tpu_custom_call.1} parent=1 // pred_check
      _
    $region3: #{tpu_custom_call.1} parent=1 // pred_check_branch
      %12 = sbr.rel (0) target = $region5
    $region4: #{tpu_custom_call.1} parent=1 // pred_region
      %14 = vsyncadd [#allocation3], 0
      %s15 = sshll.u32 %s0, 4
      %s16 = int_to_ptr.hbm [resolvable:$true] %s15
      %s17 = sshll.u32 [#allocation2], 4
      %s18 = int_to_ptr.vmem [resolvable:$true] %s17
      %23 = dma.hbm_to_vmem [thread:$0]  %s16, 256, %s18, [#allocation3], 128, 128, 8
    $region5: #{tpu_custom_call.1} parent=1 // pred_fallthru
      _
    // Predicated region
    $region6: #{tpu_custom_call.1} parent=1 // pred_check
      _
    $region7: #{tpu_custom_call.1} parent=1 // pred_check_branch
      %25 = sbr.rel (0) target = $region9
    $region8: #{tpu_custom_call.1} parent=1 // pred_region
      %27 = vsyncadd [#allocation6], 0
      %s29 = sshll.u32 %s1, 4
      %s30 = int_to_ptr.hbm [resolvable:$true] %s29
      %s31 = sshll.u32 [#allocation5], 4
      %s32 = int_to_ptr.vmem [resolvable:$true] %s31
      %34 = dma.hbm_to_vmem [thread:$0]  %s30, 16, %s32, [#allocation6]
    $region9: #{tpu_custom_call.1} parent=1 // pred_fallthru
      _
    // Predicated region
    $region10: #{tpu_custom_call.1} parent=1 // pred_check
      _
    $region11: #{tpu_custom_call.1} parent=1 // pred_check_branch
      %36 = sbr.rel (0) target = $region13
    $region12: #{tpu_custom_call.1} parent=1 // pred_region
      _
    $region13: #{tpu_custom_call.1} parent=1 // pred_fallthru
      _
    // Predicated region
    $region14: #{tpu_custom_call.1} parent=1 // pred_check
      _
    $region15: #{tpu_custom_call.1} parent=1 // pred_check_branch
      %38 = sbr.rel (0) target = $region17
    $region16: #{tpu_custom_call.1} parent=1 // pred_region
      %40 = dma.done [#allocation3], 256
    $region17: #{tpu_custom_call.1} parent=1 // pred_fallthru
      _
    // Predicated region
    $region18: #{tpu_custom_call.1} parent=1 // pred_check
      _
    $region19: #{tpu_custom_call.1} parent=1 // pred_check_branch
      %42 = sbr.rel (0) target = $region21
    $region20: #{tpu_custom_call.1} parent=1 // pred_region
      %44 = dma.done [#allocation6], 16
    $region21: #{tpu_custom_call.1} parent=1 // pred_fallthru
      _
    %v45 = vld [vmem:[#allocation2] sm:$0xff]
    %v46 = vld [vmem:[#allocation2 + $0x8] sm:$0xff]
    %vm47 = vcmask 261120
    %v48 = vsel %vm47, %v45, 0.0
    %49 = vadd.xlane.f32.xlu0 %v48
    %v50 = vpop.xlane.xlu0 %49
    %v51 = vsel %vm47, %v46, 0.0
    %52 = vadd.xlane.f32.xlu0 %v51
    %v53 = vpop.xlane.xlu0 %52
    %v54 = vrcp.pop 32.0
    %v55 = vmul.f32 32.0, %v54
    %v56 = vsub.f32 1.0, %v55
    %v57 = vmul.f32 %v54, %v56
    %v58 = vadd.f32 %v54, %v57
    %vm59 = vweird.f32 %v54
    %v60 = vsel %vm59, %v54, %v58
    %v61 = vmul.f32 %v50, %v60
    %v62 = vmul.f32 %v53, %v60
    %v63 = vsub.f32 %v45, %v61
    %v64 = vsub.f32 %v46, %v62
    %v65 = vmul.f32 %v63, %v63
    %v66 = vmul.f32 %v64, %v64
    %v67 = vsel %vm47, %v65, 0.0
    %68 = vadd.xlane.f32.xlu0 %v67
    %v69 = vpop.xlane.xlu0 %68
    %v70 = vsel %vm47, %v66, 0.0
    %71 = vadd.xlane.f32.xlu0 %v70
    %v72 = vpop.xlane.xlu0 %71
    %v73 = vmul.f32 %v69, %v60
    %v74 = vmul.f32 %v72, %v60
    %v75 = vadd.f32 %v73, 1e-05
    %v76 = vadd.f32 %v74, 1e-05
    %v77 = vrsqrt.pop %v75
    %v78 = vmul.f32 %v77, %v75
    %v79 = vmul.f32 %v78, %v77
    %v80 = vmul.f32 0.5, %v79
    %v81 = vsub.f32 1.5, %v80
    %v82 = vmul.f32 %v77, %v81
    %vm83 = vweird.f32 %v75
    %vm84 = vweird.f32 %v77
    %vm85 = vmor %vm83, %vm84
    %v86 = vsel %vm85, %v77, %v82
    %v87 = vrsqrt.pop %v76
    %v88 = vmul.f32 %v87, %v76
    %v89 = vmul.f32 %v88, %v87
    %v90 = vmul.f32 0.5, %v89
    %v91 = vsub.f32 1.5, %v90
    %v92 = vmul.f32 %v87, %v91
    %vm93 = vweird.f32 %v76
    %vm94 = vweird.f32 %v87
    %vm95 = vmor %vm93, %vm94
    %v96 = vsel %vm95, %v87, %v92
    %v97 = vmul.f32 %v63, %v86
    %v98 = vmul.f32 %v64, %v96
    %v99 = vld [vmem:[#allocation5] sm:$0x1]
    %v101 = vperm.slane %v99, 0
    %v103 = vmul.f32 %v97, %v101
    %v104 = vmul.f32 %v98, %v101
    %v105 = vld [vmem:[%s2] sm:$0x1]
    %v107 = vperm.slane %v105, 0
    %v109 = vadd.f32 %v103, %v107
    %v110 = vadd.f32 %v104, %v107
    %v111 = vpack.c.bf16 %v109, %v109
    %v112 = vpack.c.bf16 %v110, %v110
    %vm113 = vcmask 257024
    %114 = vst.msk [vmem:[#allocation7] sm:$0xf] %vm113, %v111
    %115 = vst.msk [vmem:[#allocation7 + $0x4] sm:$0xf] %vm113, %v112
    // Predicated region
    $region22: #{tpu_custom_call.1} parent=1 // pred_check
      _
    $region23: #{tpu_custom_call.1} parent=1 // pred_check_branch
      %117 = sbr.rel (0) target = $region25
    $region24: #{tpu_custom_call.1} parent=1 // pred_region
      %119 = vsyncadd [#allocation4], 0
      %s120 = sshll.u32 [#allocation7], 4
      %s121 = int_to_ptr.vmem [resolvable:$true] %s120
      %s122 = sshll.u32 %s3, 4
      %s123 = int_to_ptr.hbm [resolvable:$true] %s122
      %128 = dma.vmem_to_hbm [thread:$0]  %s121, 128, %s123, [#allocation4], 64, 64, 4
    $region25: #{tpu_custom_call.1} parent=1 // pred_fallthru
      _
    // Predicated region
    $region26: #{tpu_custom_call.1} parent=1 // pred_check
      _
    $region27: #{tpu_custom_call.1} parent=1 // pred_check_branch
      %130 = sbr.rel (0) target = $region29
    $region28: #{tpu_custom_call.1} parent=1 // pred_region
      %132 = dma.done [#allocation4], 128
    $region29: #{tpu_custom_call.1} parent=1 // pred_fallthru
      _
    %133 = vsyncpa [#allocation3], 1
    %134 = vsyncpa [#allocation6], 1
    %135 = vsyncpa [#allocation4], 1

</llo_original>
